<compile_context>
chip_gen: v5e
topology: v5e:2x2
jax: 0.10.0
libtpu: 0.0.40
codegen_flags: <defaults>
</compile_context>

<pallas_src>
import functools

import jax
import jax.numpy as jnp
from jax import lax
from jax.experimental import pallas as pl
from jax.experimental.pallas import tpu as pltpu


# ----------------------------- projection kernel -----------------------------
def _kv_proj_kernel(x_ref, wkv_ref, bkv_ref, k_ref, vext_ref, *,
                    embed_dim, compute_dtype):
    """Fused k/v 1x1-conv projection for one (batch, kv-tile) block.

    wkv_ref is (2E+1, C): rows [0:E] = k weights, rows [E:2E] = v weights,
    row 2E = 0.  bkv_ref is (2E+1, 1) with last entry 1.0, so row 2E of the
    result is a constant-1 row (softmax-denominator-as-MXU-column trick).
    """
    x = x_ref[0].astype(compute_dtype)                                    # (C, tkv)
    kv = lax.dot_general(wkv_ref[...], x, (((1,), (0,)), ((), ())),
                         preferred_element_type=jnp.float32)              # (2E+1, tkv)
    kv = kv + bkv_ref[...]
    k_ref[0] = kv[:embed_dim].astype(k_ref.dtype)                         # (E, tkv)
    vext_ref[0] = kv[embed_dim:].astype(vext_ref.dtype)                   # (E+1, tkv)


# ----------------------------- attention kernel -------------------------------
def _attn_kernel(x_q_ref, k_ref, vext_ref, wq_ref, bq_ref, wo_ref, bo_ref,
                 o_ref, q_scr, m_scr, acc_scr, *,
                 embed_dim, compute_dtype, approx_recip):
    ki = pl.program_id(2)

    # ---- first kv step: project q for this q-tile, reset online-softmax state.
    @pl.when(ki == 0)
    def _init():
        # x_q tile is (C, tq); transpose the small tile once per q-tile
        # (amortized over all kv steps) so the q projection is a standard
        # (tq, C) @ (C, E) MXU matmul.
        x_qt = jnp.transpose(x_q_ref[0]).astype(compute_dtype)            # (tq, C)
        q = lax.dot_general(x_qt, wq_ref[...], (((1,), (0,)), ((), ())),
                            preferred_element_type=jnp.float32)           # (tq, E)
        q = q + bq_ref[...]
        # Note: q is rounded to compute_dtype before the score matmuls (one
        # extra rounding vs the pure-f32 reference in the bf16 fast path).
        q_scr[...] = q.astype(q_scr.dtype)
        m_scr[...] = jnp.full_like(m_scr, -jnp.inf)
        acc_scr[...] = jnp.zeros_like(acc_scr)

    # ---- scores: (tq, E) @ (E, tkv) -> (tq, tkv); contraction over E.
    s = lax.dot_general(q_scr[...], k_ref[0], (((1,), (0,)), ((), ())),
                        preferred_element_type=jnp.float32)

    # ---- online softmax update (f32 on VPU/EUP).  The running denominator
    #      lives in the last column of acc_scr thanks to v_ext's ones row.
    m_prev = m_scr[...]
    m_new = jnp.maximum(m_prev, jnp.max(s, axis=-1, keepdims=True))        # (tq, 1)
    alpha = jnp.exp(m_prev - m_new)
    p = jnp.exp(s - m_new)                                                 # (tq, tkv)
    acc_scr[...] = alpha * acc_scr[...] + lax.dot_general(
        p.astype(compute_dtype), vext_ref[0],
        (((1,), (1,)), ((), ())),                                          # contract over tkv
        preferred_element_type=jnp.float32)                                # (tq, E+1)
    m_scr[...] = m_new

    # ---- last kv step: normalize, expansion 1x1 conv, bias, residual.
    @pl.when(ki == pl.num_programs(2) - 1)
    def _finalize():
        acc = acc_scr[...]
        l = acc[:, embed_dim:]                                             # (tq, 1) denom
        e = acc[:, :embed_dim] * pl.reciprocal(l, approx=approx_recip)     # (tq, E)
        out = lax.dot_general(wo_ref[...], e.astype(compute_dtype),
                              (((1,), (1,)), ((), ())),
                              preferred_element_type=jnp.float32)          # (C, tq)
        out = out + bo_ref[...] + x_q_ref[0].astype(jnp.float32)           # bias + residual (f32)
        o_ref[0] = out.astype(o_ref.dtype)


# --------------------------------- wrapper ------------------------------------
def _pick_tile(requested, hw):
    """Largest valid HW tile <= requested: divides HW and is a multiple of 128
    (or the full HW extent)."""
    t = min(requested, hw)
    if hw % t == 0 and (t % 128 == 0 or t == hw):
        return t
    cand = (t // 128) * 128
    while cand >= 128:
        if hw % cand == 0:
            return cand
        cand -= 128
    return hw


def _vmem_cap_bytes():
    """Physical VMEM minus ~16 MiB headroom for compiler-internal scratch;
    conservative (v7x-sized) fallback when the query is unavailable."""
    try:
        info = pltpu.get_tpu_info()
        phys = int(getattr(info, "vmem_capacity_bytes", 0) or 0)
        if phys > 0:
            return max(phys - 16 * 1024 * 1024, 32 * 1024 * 1024)
    except Exception:
        pass
    return 48 * 1024 * 1024


def nonlocal_block(x_nchw, params, *, tq=512, tkv=512, compute_dtype=jnp.bfloat16):
    """x_nchw: (B, C, H, W) float32.  params: dict (see init_params)."""
    B, C, H, W = x_nchw.shape
    HW = H * W
    E = params["wq"].shape[1]

    # Megacore: parallel grid axes are (B, qi); keep B*num_q >= 2 when the
    # spatial extent allows it so v7x's second TensorCore is not idle.
    tq_req = tq
    if B == 1 and HW >= 256:
        tq_req = min(tq_req, HW // 2)
    tq = _pick_tile(tq_req, HW)
    tkv = _pick_tile(tkv, HW)
    num_q = HW // tq
    num_kv = HW // tkv

    # NCHW -> (B, C, HW): pure reshape, no transpose pass through HBM.
    x_seq = x_nchw.reshape(B, C, HW)

    cdt = jnp.dtype(compute_dtype)
    cbytes = cdt.itemsize
    xbytes = x_seq.dtype.itemsize
    approx_recip = cdt != jnp.dtype(jnp.float32)

    # MXU operands in compute_dtype (bf16 by default); biases stay f32.
    wq = params["wq"].astype(compute_dtype)                      # (C, E)
    wo = params["wo"].astype(compute_dtype)                      # (C, E)
    bq = params["bq"].astype(jnp.float32)                        # (1, E)
    bo = params["bo"].astype(jnp.float32)                        # (C, 1)
    # Fused k/v projection weights, extended with a zero row / unit bias so the
    # projected v slab carries a constant-1 row (free softmax denominator).
    wkv_ext = jnp.concatenate(
        [params["wkv"], jnp.zeros((1, C), params["wkv"].dtype)], axis=0
    ).astype(compute_dtype)                                      # (2E+1, C)
    bkv_ext = jnp.concatenate(
        [params["bkv"], jnp.ones((1, 1), params["bkv"].dtype)], axis=0
    ).astype(jnp.float32)                                        # (2E+1, 1)

    vmem_cap = _vmem_cap_bytes()

    # ---------------- pass 1: k / v projection (once per batch element) --------
    proj_kernel = functools.partial(
        _kv_proj_kernel, embed_dim=E, compute_dtype=compute_dtype)

    proj_vmem_est = (
        2 * C * tkv * xbytes
        + 2 * 2 * (2 * E + 1) * tkv * cbytes
        + 2 * wkv_ext.size * cbytes + 2 * bkv_ext.size * 4
        + 4 * (2 * E + 1) * tkv * 4
    )
    proj_cost = pl.CostEstimate(
        flops=int(2 * B * HW * (2 * E + 1) * C),
        transcendentals=0,
        bytes_accessed=int(B * C * HW * xbytes + B * (2 * E + 1) * HW * cbytes
                           + wkv_ext.size * cbytes + bkv_ext.size * 4),
    )

    k_seq, vext_seq = pl.pallas_call(
        proj_kernel,
        out_shape=(jax.ShapeDtypeStruct((B, E, HW), compute_dtype),
                   jax.ShapeDtypeStruct((B, E + 1, HW), compute_dtype)),
        grid_spec=pltpu.PrefetchScalarGridSpec(
            num_scalar_prefetch=0,
            grid=(B, num_kv),
            in_specs=[
                pl.BlockSpec((1, C, tkv), lambda b, ki: (b, 0, ki)),   # x tile
                pl.BlockSpec(wkv_ext.shape, lambda b, ki: (0, 0)),
                pl.BlockSpec(bkv_ext.shape, lambda b, ki: (0, 0)),
            ],
            out_specs=[
                pl.BlockSpec((1, E, tkv), lambda b, ki: (b, 0, ki)),       # k
                pl.BlockSpec((1, E + 1, tkv), lambda b, ki: (b, 0, ki)),   # v + ones row
            ],
        ),
        compiler_params=pltpu.CompilerParams(
            dimension_semantics=("parallel", "parallel"),
            vmem_limit_bytes=int(min(max(2 * proj_vmem_est, 32 * 1024 * 1024),
                                     vmem_cap)),
        ),
        cost_estimate=proj_cost,
    )(x_seq, wkv_ext, bkv_ext)

    # ---------------- pass 2: flash-style attention + expansion + residual -----
    attn_kernel = functools.partial(
        _attn_kernel, embed_dim=E, compute_dtype=compute_dtype,
        approx_recip=approx_recip)

    # Deeper pipelining only on the blocks whose index changes every inner step.
    kv_spec_kwargs = {}
    if num_kv >= 3:
        kv_spec_kwargs["pipeline_mode"] = pl.Buffered(3)
    kv_bufs = 3 if num_kv >= 3 else 2

    vmem_est = (
        2 * C * tq * xbytes                          # x_q tile (double-buffered)
        + 2 * C * tq * xbytes                        # output tile (double-buffered)
        + kv_bufs * (2 * E + 1) * tkv * cbytes       # k / v_ext tiles
        + 2 * (wq.size + wo.size) * cbytes           # weights (double-buffered)
        + 2 * (bq.size + bo.size) * 4
        + tq * E * cbytes + tq * 4 + tq * (E + 1) * 4    # q / m / acc scratch
        + 8 * tq * tkv * 4                           # s / p / exp temporaries
        + 2 * tq * max(E + 1, C) * 4                 # matmul result temporaries
    )
    vmem_limit = int(min(max(int(1.5 * vmem_est), 32 * 1024 * 1024), vmem_cap))

    cost = pl.CostEstimate(
        flops=int(2 * B * (2 * HW * C * E + HW * HW * (2 * E + 1))),
        transcendentals=int(B * HW * HW + B * HW * num_kv),
        bytes_accessed=int(2 * B * C * HW * xbytes
                           + B * num_q * (2 * E + 1) * HW * cbytes
                           + (wq.size + wo.size) * cbytes
                           + (bq.size + bo.size) * 4),
    )

    out_seq = pl.pallas_call(
        attn_kernel,
        out_shape=jax.ShapeDtypeStruct((B, C, HW), x_nchw.dtype),
        grid_spec=pltpu.PrefetchScalarGridSpec(
            num_scalar_prefetch=0,
            grid=(B, num_q, num_kv),                        # kv reduction axis last
            in_specs=[
                pl.BlockSpec((1, C, tq), lambda b, qi, ki: (b, 0, qi)),        # x (q / residual)
                pl.BlockSpec((1, E, tkv), lambda b, qi, ki: (b, 0, ki),
                             **kv_spec_kwargs),                                # k tile
                pl.BlockSpec((1, E + 1, tkv), lambda b, qi, ki: (b, 0, ki),
                             **kv_spec_kwargs),                                # v_ext tile
                pl.BlockSpec(wq.shape, lambda b, qi, ki: (0, 0)),
                pl.BlockSpec(bq.shape, lambda b, qi, ki: (0, 0)),
                pl.BlockSpec(wo.shape, lambda b, qi, ki: (0, 0)),
                pl.BlockSpec(bo.shape, lambda b, qi, ki: (0, 0)),
            ],
            out_specs=pl.BlockSpec((1, C, tq), lambda b, qi, ki: (b, 0, qi)),
            scratch_shapes=[
                pltpu.VMEM((tq, E), compute_dtype),         # projected q tile
                pltpu.VMEM((tq, 1), jnp.float32),           # running max
                pltpu.VMEM((tq, E + 1), jnp.float32),       # f32 acc (+ running-sum column)
            ],
        ),
        compiler_params=pltpu.CompilerParams(
            dimension_semantics=("parallel", "parallel", "arbitrary"),
            vmem_limit_bytes=vmem_limit,
        ),
        cost_estimate=cost,
    )(x_seq, k_seq, vext_seq, wq, bq, wo, bo)

    return out_seq.reshape(B, C, H, W)


# --------------------------------- params / ref --------------------------------
def init_params(key, in_channels):
    """Synthetic parameters matching the PyTorch module's 1x1 convs.
    wq/wo stored (C, E) (used as x^T @ W / W @ e^T); k and v conv weights fused
    into wkv (2E, C) with k rows first, then v rows; matching biases."""
    embed_dim = in_channels // 2
    ks = jax.random.split(key, 8)
    scale = 0.1
    wk = scale * jax.random.normal(ks[2], (embed_dim, in_channels), jnp.float32)
    wv = scale * jax.random.normal(ks[4], (embed_dim, in_channels), jnp.float32)
    bk = scale * jax.random.normal(ks[3], (embed_dim, 1), jnp.float32)
    bv = scale * jax.random.normal(ks[5], (embed_dim, 1), jnp.float32)
    return {
        "wq": scale * jax.random.normal(ks[0], (in_channels, embed_dim), jnp.float32),
        "bq": scale * jax.random.normal(ks[1], (1, embed_dim), jnp.float32),
        "wkv": jnp.concatenate([wk, wv], axis=0),    # (2E, C)
        "bkv": jnp.concatenate([bk, bv], axis=0),    # (2E, 1)
        "wo": scale * jax.random.normal(ks[6], (in_channels, embed_dim), jnp.float32),
        "bo": scale * jax.random.normal(ks[7], (in_channels, 1), jnp.float32),
    }


def nonlocal_block_ref(x_nchw, params):
    """Pure-JAX reference mirroring the PyTorch forward (true f32)."""
    hi = lax.Precision.HIGHEST
    B, C, H, W = x_nchw.shape
    E = params["wq"].shape[1]
    x = x_nchw.reshape(B, C, H * W)                                                   # (B, C, N)
    q = jnp.einsum("bcn,ce->bne", x, params["wq"], precision=hi) + params["bq"]       # (B, N, E)
    kv = jnp.einsum("fc,bcn->bfn", params["wkv"], x, precision=hi) + params["bkv"]    # (B, 2E, N)
    k, v = kv[:, :E, :], kv[:, E:, :]                                                 # (B, E, N)
    attn = jax.nn.softmax(jnp.einsum("bne,bem->bnm", q, k, precision=hi), axis=-1)
    emb = jnp.einsum("bnm,bem->bne", attn, v, precision=hi)                           # (B, N, E)
    out = jnp.einsum("ce,bne->bcn", params["wo"], emb, precision=hi) + params["bo"] + x
    return out.reshape(B, C, H, W)


if __name__ == "__main__":
    key = jax.random.PRNGKey(0)
    k_x, k_p, k_x2, k_p2 = jax.random.split(key, 4)

    # --- case 1 & 2: B=2, C=4, 16x16 (HW=256) ---
    B, C, H, W = 2, 4, 16, 16
    x = jax.random.normal(k_x, (B, C, H, W), jnp.float32)
    params = init_params(k_p, C)
    ref = nonlocal_block_ref(x, params)

    # Exact-precision path (f32 MXU operands), small tiles -> exercises the
    # 2x2 q/kv tiling and the multi-step online softmax.
    out_f32 = jax.block_until_ready(
        nonlocal_block(x, params, tq=128, tkv=128, compute_dtype=jnp.float32))
    assert out_f32.shape == (B, C, H, W)
    assert jnp.allclose(out_f32, ref, atol=1e-3, rtol=1e-3), "f32 kernel mismatch vs reference"

    # Default fast path: bf16 MXU operands, f32 softmax/accumulation, default tiles.
    out_fast = jax.block_until_ready(nonlocal_block(x, params))
    assert out_fast.shape == (B, C, H, W)
    assert jnp.allclose(out_fast, ref, atol=1e-2, rtol=1e-2), "bf16 kernel mismatch vs reference"

    # --- case 3: B=1, C=8, 32x32 (HW=1024) -> deep kv loop (num_kv=8) exercising
    #     the Buffered(3) kv pipeline and the B==1 megacore tq cap. ---
    B2, C2, H2, W2 = 1, 8, 32, 32
    x2 = jax.random.normal(k_x2, (B2, C2, H2, W2), jnp.float32)
    params2 = init_params(k_p2, C2)
    ref2 = nonlocal_block_ref(x2, params2)
    out2 = jax.block_until_ready(
        nonlocal_block(x2, params2, tq=256, tkv=128, compute_dtype=jnp.float32))
    assert out2.shape == (B2, C2, H2, W2)
    assert jnp.allclose(out2, ref2, atol=1e-3, rtol=1e-3), "deep-kv kernel mismatch vs reference"

    print("KERNEL_OK")
</pallas_src>

<mosaic_0001>
module attributes {stable_mosaic.version = 11 : i64} {
  func.func @_kv_proj_kernel(%arg0: i32, %arg1: i32, %arg2: memref<1x4x128xf32, #tpu.memory_space<vmem>>, %arg3: memref<5x4xf32, #tpu.memory_space<vmem>>, %arg4: memref<5x1xf32, #tpu.memory_space<vmem>>, %arg5: memref<1x2x128xf32, #tpu.memory_space<vmem>>, %arg6: memref<1x3x128xf32, #tpu.memory_space<vmem>>) attributes {dimension_semantics = [#tpu.dimension_semantics<parallel>, #tpu.dimension_semantics<parallel>], iteration_bounds = array<i64: 2, 2>, scalar_prefetch = 0 : i64, scratch_operands = 0 : i64, tpu.core_type = #tpu.core_type<tc>, window_params = [{transform_indices = @transform_0, window_bounds = array<i64: 1, 4, 128>}, {pipeline_mode = #tpu.pipeline_mode<synchronous>, transform_indices = @transform_1, window_bounds = array<i64: 5, 4>}, {pipeline_mode = #tpu.pipeline_mode<synchronous>, transform_indices = @transform_2, window_bounds = array<i64: 5, 1>}, {transform_indices = @transform_3, window_bounds = array<i64: 1, 2, 128>}, {transform_indices = @transform_4, window_bounds = array<i64: 1, 3, 128>}]} {
    %c0 = arith.constant 0 : index
    %c0_0 = arith.constant 0 : index
    %c0_1 = arith.constant 0 : index
    %0 = vector.load %arg2[%c0, %c0_0, %c0_1] : memref<1x4x128xf32, #tpu.memory_space<vmem>>, vector<1x4x128xf32>
    %1 = vector.shape_cast %0 : vector<1x4x128xf32> to vector<4x128xf32>
    %c0_2 = arith.constant 0 : index
    %c0_3 = arith.constant 0 : index
    %2 = vector.load %arg3[%c0_2, %c0_3] : memref<5x4xf32, #tpu.memory_space<vmem>>, vector<5x4xf32>
    %cst = arith.constant dense<0.000000e+00> : vector<5x128xf32>
    %3 = tpu.matmul %2, %1, %cst {dimension_numbers = #tpu.dot_dimension_numbers<[1], [0], [0], [1], [0, 0, 1, 1], [], []>} : vector<5x4xf32>, vector<4x128xf32>, vector<5x128xf32> -> vector<5x128xf32>
    %c0_4 = arith.constant 0 : index
    %c0_5 = arith.constant 0 : index
    %4 = vector.load %arg4[%c0_4, %c0_5] : memref<5x1xf32, #tpu.memory_space<vmem>>, vector<5x1xf32>
    %5 = vector.broadcast %4 : vector<5x1xf32> to vector<5x128xf32>
    %6 = arith.addf %3, %5 : vector<5x128xf32>
    %7 = vector.extract_strided_slice %6 {offsets = [0, 0], sizes = [2, 128], strides = [1, 1]} : vector<5x128xf32> to vector<2x128xf32>
    %c0_6 = arith.constant 0 : index
    %c0_7 = arith.constant 0 : index
    %c0_8 = arith.constant 0 : index
    %8 = vector.load %arg5[%c0_6, %c0_7, %c0_8] : memref<1x2x128xf32, #tpu.memory_space<vmem>>, vector<1x2x128xf32>
    %9 = vector.shape_cast %8 : vector<1x2x128xf32> to vector<2x128xf32>
    %10 = vector.shape_cast %7 : vector<2x128xf32> to vector<1x2x128xf32>
    tpu.vector_store %arg5[%c0_6, %c0_7, %c0_8], %10 {strides = array<i32>} : memref<1x2x128xf32, #tpu.memory_space<vmem>>, vector<1x2x128xf32>,
    %11 = vector.extract_strided_slice %6 {offsets = [2, 0], sizes = [3, 128], strides = [1, 1]} : vector<5x128xf32> to vector<3x128xf32>
    %c0_9 = arith.constant 0 : index
    %c0_10 = arith.constant 0 : index
    %c0_11 = arith.constant 0 : index
    %12 = vector.load %arg6[%c0_9, %c0_10, %c0_11] : memref<1x3x128xf32, #tpu.memory_space<vmem>>, vector<1x3x128xf32>
    %13 = vector.shape_cast %12 : vector<1x3x128xf32> to vector<3x128xf32>
    %14 = vector.shape_cast %11 : vector<3x128xf32> to vector<1x3x128xf32>
    tpu.vector_store %arg6[%c0_9, %c0_10, %c0_11], %14 {strides = array<i32>} : memref<1x3x128xf32, #tpu.memory_space<vmem>>, vector<1x3x128xf32>,
    return
  }
  func.func @transform_0(%arg0: i32, %arg1: i32) -> (i32, i32, i32) {
    %c0_i32 = arith.constant 0 : i32
    %c0_i32_0 = arith.constant 0 : i32
    return %arg0, %c0_i32, %arg1 : i32, i32, i32
  }
  func.func @transform_1(%arg0: i32, %arg1: i32) -> (i32, i32) {
    %c0_i32 = arith.constant 0 : i32
    %c0_i32_0 = arith.constant 0 : i32
    %c0_i32_1 = arith.constant 0 : i32
    return %c0_i32, %c0_i32_0 : i32, i32
  }
  func.func @transform_2(%arg0: i32, %arg1: i32) -> (i32, i32) {
    %c0_i32 = arith.constant 0 : i32
    %c0_i32_0 = arith.constant 0 : i32
    %c0_i32_1 = arith.constant 0 : i32
    return %c0_i32, %c0_i32_0 : i32, i32
  }
  func.func @transform_3(%arg0: i32, %arg1: i32) -> (i32, i32, i32) {
    %c0_i32 = arith.constant 0 : i32
    %c0_i32_0 = arith.constant 0 : i32
    return %arg0, %c0_i32, %arg1 : i32, i32, i32
  }
  func.func @transform_4(%arg0: i32, %arg1: i32) -> (i32, i32, i32) {
    %c0_i32 = arith.constant 0 : i32
    %c0_i32_0 = arith.constant 0 : i32
    return %arg0, %c0_i32, %arg1 : i32, i32, i32
  }
}

</mosaic_0001>

<llo_original>
// kernel: tpu_custom_call.1
$region0: #{tpu_custom_call.1}
  #allocation0 [shape = 'u32[]', space=smem, size = 0x4, offset = 0x4, fixed_abs, tag = 'smem constant byte address 0x4 - core index']
  #allocation1 [shape = 'u32[72,128]{1,0:T(1,128)}', space=vmem, size = 0x9000, scoped, tag = 'internal scratch']
  %s0 = inlined_call_operand.vmem [shape: f32[2,4,256], index: 0, kind: input, shape index: {}]
  %s1 = inlined_call_operand.vmem [shape: f32[5,4], index: 1, kind: input, shape index: {}]
  %s2 = inlined_call_operand.vmem [shape: f32[5,1], index: 2, kind: input, shape index: {}]
  %s3 = inlined_call_operand.hbm [shape: f32[2,2,256], index: 3, kind: output, shape index: {0}]
  %s4 = inlined_call_operand.vmem [shape: f32[2,3,256], index: 4, kind: output, shape index: {1}]
  %5 = xla_tuple %s3, %s4
  %s6 = sld [smem:[#allocation0]]
  $region53: #{tpu_custom_call.1} parent=0
    _
  %s8 = ssub.s32 1, %s6
  %s9 = scalar_select 0, %s8, %s6
  $region1: #{tpu_custom_call.1} parent=0
    #allocation2 [shape = 'u8[2048]{0}', space=vmem, size = 0x800, scoped, tag = 'output window, operand 0']
    #allocation3 [shape = 's32[2]{0}', space=sflag, size = 0x8, scoped, tag = 'scoped memory for tpu_custom_call.1']
    %10 = vsyncpa [#allocation3], 0
    %s11 = scalar_lea.sflag [#allocation3], 1
    %12 = vsyncpa %s11, 0
    loop: start=0, step=1, limit=6
    $region2: #{tpu_custom_call.1} parent=1 // loop_pre_header
      _
    $region3: #{tpu_custom_call.1} parent=1 // loop_header
      %s14 = sphi 0, %s18
      %p15 = scmp.ge.s32.totalorder %s14, 6
      %s21 = sphi 0, %s33
      %s22 = sphi 0, %s29
      %s23 = sphi 0, %s21
      %s24 = sphi 0, %s22
      %s25 = sphi 0, %s23
      %s26 = sphi 0, %s24
      %s38 = sphi 0, %s40
      %s41 = sphi 0, %s38
      %s42 = sphi 0, %s41
      %s58 = sphi 0, %s42
      %s62 = sphi 0, %s62
      %s64 = sphi 0, %s62
      %s65 = sphi 0, %s64
      %s79 = sphi 0, %s65
      %s83 = sphi 0, %s83
      %s85 = sphi 0, %s83
      %s86 = sphi 0, %s85
      %s100 = sphi 0, %s86
      %s108 = sphi 0, %s110
      %s111 = sphi 0, %s108
      %s112 = sphi 0, %s111
      %s128 = sphi 0, %s112
      %s136 = sphi 0, %s138
      %s139 = sphi 0, %s136
      %s140 = sphi 0, %s139
      %s156 = sphi 0, %s140
    $region4: #{tpu_custom_call.1} parent=1 // loop_header_branch
      %17 = sbr.rel (%p15) target = $region8
    $region5: #{tpu_custom_call.1} parent=1 // loop_body
      %s19 = ssub.s32 %s14, 1
      %s20 = ssub.s32 %s14, 2
      %s27 = sadd.s32 1, %s22
      %p28 = scmp.ge.s32.totalorder %s27, 2
      %s29 = scalar_select %p28, 0, %s27
      %s30 = sadd.s32 1, %s21
      %s31 = scalar_select %p28, %s30, %s21
      %p32 = scmp.ge.s32.totalorder %s31, 2
      %s33 = scalar_select %p32, 0, %s31
      %s34 = ssub.s32 %s21, %s33
      %s35 = ssub.s32 %s22, %s29
      %s36 = sor.u32 %s34, %s35
      %p37 = scmp.eq.s32.totalorder %s36, 0
      %s39 = sadd.s32 %s38, 1
      %s40 = scalar_select %p37, %s38, %s39
      %p43 = pneg %p37
      %p44 = scmp.eq.s32.totalorder %s14, 3
      %p45 = por %p43, %p44
      %p46 = scmp.ne.s32.totalorder %s38, %s41
      %p47 = scmp.eq.s32.totalorder %s14, 0
      %p48 = por %p46, %p47
      %p49 = scmp.ne.s32.totalorder %s38, %s41
      %p50 = scmp.eq.s32.totalorder %s19, 3
      %p51 = por %p49, %p50
      %p52 = scmp.ne.s32.totalorder %s41, %s42
      %p53 = scmp.eq.s32.totalorder %s19, 0
      %p54 = por %p52, %p53
      %p55 = scmp.ne.s32.totalorder %s41, %s42
      %p56 = scmp.eq.s32.totalorder %s20, 3
      %p57 = por %p55, %p56
      %p59 = scmp.ne.s32.totalorder %s42, %s58
      %p60 = scmp.eq.s32.totalorder %s20, 0
      %p61 = por %p59, %p60
      %s63 = sadd.s32 %s62, 1
      %p66 = scmp.eq.s32.totalorder %s14, 3
      %p67 = scmp.ne.s32.totalorder %s62, %s64
      %p68 = scmp.eq.s32.totalorder %s14, 0
      %p69 = por %p67, %p68
      %p70 = scmp.ne.s32.totalorder %s62, %s64
      %p71 = scmp.eq.s32.totalorder %s19, 3
      %p72 = por %p70, %p71
      %p73 = scmp.ne.s32.totalorder %s64, %s65
      %p74 = scmp.eq.s32.totalorder %s19, 0
      %p75 = por %p73, %p74
      %p76 = scmp.ne.s32.totalorder %s64, %s65
      %p77 = scmp.eq.s32.totalorder %s20, 3
      %p78 = por %p76, %p77
      %p80 = scmp.ne.s32.totalorder %s65, %s79
      %p81 = scmp.eq.s32.totalorder %s20, 0
      %p82 = por %p80, %p81
      %s84 = sadd.s32 %s83, 1
      %p87 = scmp.eq.s32.totalorder %s14, 3
      %p88 = scmp.ne.s32.totalorder %s83, %s85
      %p89 = scmp.eq.s32.totalorder %s14, 0
      %p90 = por %p88, %p89
      %p91 = scmp.ne.s32.totalorder %s83, %s85
      %p92 = scmp.eq.s32.totalorder %s19, 3
      %p93 = por %p91, %p92
      %p94 = scmp.ne.s32.totalorder %s85, %s86
      %p95 = scmp.eq.s32.totalorder %s19, 0
      %p96 = por %p94, %p95
      %p97 = scmp.ne.s32.totalorder %s85, %s86
      %p98 = scmp.eq.s32.totalorder %s20, 3
      %p99 = por %p97, %p98
      %p101 = scmp.ne.s32.totalorder %s86, %s100
      %p102 = scmp.eq.s32.totalorder %s20, 0
      %p103 = por %p101, %p102
      %s104 = ssub.s32 %s21, %s33
      %s105 = ssub.s32 %s22, %s29
      %s106 = sor.u32 %s104, %s105
      %p107 = scmp.eq.s32.totalorder %s106, 0
      %s109 = sadd.s32 %s108, 1
      %s110 = scalar_select %p107, %s108, %s109
      %p113 = pneg %p107
      %p114 = scmp.eq.s32.totalorder %s14, 3
      %p115 = por %p113, %p114
      %p116 = scmp.ne.s32.totalorder %s108, %s111
      %p117 = scmp.eq.s32.totalorder %s14, 0
      %p118 = por %p116, %p117
      %p119 = scmp.ne.s32.totalorder %s108, %s111
      %p120 = scmp.eq.s32.totalorder %s19, 3
      %p121 = por %p119, %p120
      %p122 = scmp.ne.s32.totalorder %s111, %s112
      %p123 = scmp.eq.s32.totalorder %s19, 0
      %p124 = por %p122, %p123
      %p125 = scmp.ne.s32.totalorder %s111, %s112
      %p126 = scmp.eq.s32.totalorder %s20, 3
      %p127 = por %p125, %p126
      %p129 = scmp.ne.s32.totalorder %s112, %s128
      %p130 = scmp.eq.s32.totalorder %s20, 0
      %p131 = por %p129, %p130
      %s132 = ssub.s32 %s21, %s33
      %s133 = ssub.s32 %s22, %s29
      %s134 = sor.u32 %s132, %s133
      %p135 = scmp.eq.s32.totalorder %s134, 0
      %s137 = sadd.s32 %s136, 1
      %s138 = scalar_select %p135, %s136, %s137
      %p141 = pneg %p135
      %p142 = scmp.eq.s32.totalorder %s14, 3
      %p143 = por %p141, %p142
      %p144 = scmp.ne.s32.totalorder %s136, %s139
      %p145 = scmp.eq.s32.totalorder %s14, 0
      %p146 = por %p144, %p145
      %p147 = scmp.ne.s32.totalorder %s136, %s139
      %p148 = scmp.eq.s32.totalorder %s19, 3
      %p149 = por %p147, %p148
      %p150 = scmp.ne.s32.totalorder %s139, %s140
      %p151 = scmp.eq.s32.totalorder %s19, 0
      %p152 = por %p150, %p151
      %p153 = scmp.ne.s32.totalorder %s139, %s140
      %p154 = scmp.eq.s32.totalorder %s20, 3
      %p155 = por %p153, %p154
      %p157 = scmp.ne.s32.totalorder %s140, %s156
      %p158 = scmp.eq.s32.totalorder %s20, 0
      %p159 = por %p157, %p158
      %p160 = scmp.le.s32.totalorder 1, %s14
      %p161 = scmp.lt.s32.totalorder %s14, 5
      %p162 = pnand %p160, %p161
      %p163 = pneg %p162
      // Predicated region
      $region9: #{tpu_custom_call.1} parent=5 // pred_check
        _
      $region10: #{tpu_custom_call.1} parent=5 // pred_check_branch
        %165 = sbr.rel (%p162) target = $region12
      $region11: #{tpu_custom_call.1} parent=5 // pred_region
        %s166 = ssub.s32 %s14, 1
        // Predicated region
        $region13: #{tpu_custom_call.1} parent=11 // pred_check
          %p167 = pneg %p75
        $region14: #{tpu_custom_call.1} parent=11 // pred_check_branch
          %169 = sbr.rel (%p167) target = $region16
        $region15: #{tpu_custom_call.1} parent=11 // pred_region
          _
        $region16: #{tpu_custom_call.1} parent=11 // pred_fallthru
          _
        // Predicated region
        $region17: #{tpu_custom_call.1} parent=11 // pred_check
          %p170 = pneg %p96
        $region18: #{tpu_custom_call.1} parent=11 // pred_check_branch
          %172 = sbr.rel (%p170) target = $region20
        $region19: #{tpu_custom_call.1} parent=11 // pred_region
          _
        $region20: #{tpu_custom_call.1} parent=11 // pred_fallthru
          _
      $region12: #{tpu_custom_call.1} parent=5 // pred_fallthru
        _
      %p173 = scmp.lt.s32.totalorder %s14, 4
      // Predicated region
      $region21: #{tpu_custom_call.1} parent=5 // pred_check
        %p174 = pneg %p173
      $region22: #{tpu_custom_call.1} parent=5 // pred_check_branch
        %176 = sbr.rel (%p174) target = $region24
      $region23: #{tpu_custom_call.1} parent=5 // pred_region
        // Predicated region
        $region25: #{tpu_custom_call.1} parent=23 // pred_check
          %p177 = pneg %p48
        $region26: #{tpu_custom_call.1} parent=23 // pred_check_branch
          %179 = sbr.rel (%p177) target = $region28
        $region27: #{tpu_custom_call.1} parent=23 // pred_region
          %p180 = scmp.lt.s32.totalorder %s21, 1
          %s181 = scalar_select %p180, %s21, 1
          %p182 = scmp.lt.s32.totalorder %s22, 1
          %s183 = scalar_select %p182, %s22, 1
          %s184 = smul.addr %s181, 2
          %s185 = sadd.s32 %s183, %s184
          %s186 = smul.addr %s185, 4
          %s187 = scalar_lea.vmem %s0, %s186
        $region28: #{tpu_custom_call.1} parent=23 // pred_fallthru
          _
      $region24: #{tpu_custom_call.1} parent=5 // pred_fallthru
        _
      %p188 = scmp.le.s32.totalorder 1, %s14
      %p189 = scmp.lt.s32.totalorder %s14, 5
      %p190 = pnand %p188, %p189
      %p191 = pneg %p190
      // Predicated region
      $region29: #{tpu_custom_call.1} parent=5 // pred_check
        _
      $region30: #{tpu_custom_call.1} parent=5 // pred_check_branch
        %193 = sbr.rel (%p190) target = $region32
      $region31: #{tpu_custom_call.1} parent=5 // pred_region
        %s194 = ssub.s32 %s14, 1
        %p195 = scmp.lt.s32.totalorder %s23, 1
        %s196 = scalar_select %p195, %s23, 1
        %p197 = scmp.lt.s32.totalorder %s24, 1
        %s198 = scalar_select %p197, %s24, 1
        %s199 = smul.addr %s196, 2
        %s200 = sadd.s32 %s198, %s199
        %s201 = smul.addr %s200, 4
        %s202 = scalar_lea.vmem %s0, %s201
        %p203 = pneg %p54
        %p204 = pneg %p51
        %p205 = pneg %p75
        %p206 = pneg %p72
        %p207 = pneg %p96
        %p208 = pneg %p93
        %p209 = pneg %p124
        %p210 = pneg %p121
        %s211 = sand.u32 %s111, 1
        %s212 = scalar_lea.sflag [#allocation3], %s211
        %s213 = sand.u32 %s111, 1
        %s214 = smul.addr %s213, 2
        %s215 = scalar_lea.vmem [#allocation2], %s214
        %p216 = pneg %p152
        %p217 = pneg %p149
        %p218 = scmp.lt.s32.totalorder %s23, 1
        %s219 = scalar_select %p218, %s23, 1
        %p220 = scmp.lt.s32.totalorder %s24, 1
        %s221 = scalar_select %p220, %s24, 1
        %s222 = smul.addr %s219, 2
        %s223 = sadd.s32 %s221, %s222
        %s224 = smul.addr %s223, 4
        %s225 = scalar_lea.vmem %s4, %s224
        %p226 = scmp.lt.s32.totalorder %s23, 1
        %s227 = scalar_select %p226, %s23, 1
        %p228 = scmp.lt.s32.totalorder %s24, 1
        %s229 = scalar_select %p228, %s24, 1
        %s230 = smul.addr %s227, 2
        %s231 = sadd.s32 %s229, %s230
        %s232 = smul.addr %s231, 4
        %s233 = scalar_lea.vmem %s0, %s232
        %p234 = scmp.lt.s32.totalorder %s23, 1
        %s235 = scalar_select %p234, %s23, 1
        %p236 = scmp.lt.s32.totalorder %s24, 1
        %s237 = scalar_select %p236, %s24, 1
        %s238 = smul.addr %s235, 2
        %s239 = sadd.s32 %s237, %s238
        %s240 = smul.addr %s239, 4
        %s241 = scalar_lea.vmem %s4, %s240
        %v242 = vld [vmem:[%s233] sm:$0xf]
        %v243 = vld [vmem:[%s1] sm:$0x1f]
        %v244 = vld [vmem:[%s2] sm:$0x1f]
        %246 = vset.pattern.permute.xlu0 0
        %247 = vperm.xlu0 %246, %v244
        %v248 = vpop.permute.xlu0 %247
        %vm250 = vcmask 31744
        %v252 = vsel %vm250, %v243, 0
        %vm254 = vcmask 1043456
        %v256 = vsel %vm254, %v242, 0
        %258 = vmatpush.msra.mxu0 0.0
        %259 = vmatpush.msra.mxu0 0.0
        %260 = vmatpush.msra.mxu0 0.0
        %261 = vmatpush.msra.mxu0 0.0
        %262 = vmatpush.msra.mxu0 0.0
        %263 = vmatpush.msra.mxu0 0.0
        %264 = vmatpush.msra.mxu0 0.0
        %265 = vmatpush.msra.mxu0 0.0
        %266 = vmatpush.msra.mxu0 0.0
        %267 = vmatpush.msra.mxu0 0.0
        %268 = vmatpush.msra.mxu0 0.0
        %269 = vmatpush.msra.mxu0 0.0
        %270 = vmatpush.msra.mxu0 0.0
        %271 = vmatpush.msra.mxu0 0.0
        %272 = vmatpush.msra.mxu0 0.0
        %273 = vmatpush.msra.mxu0 %v256
        %274 = vmatmul.f32.gmra.mxu0 %v252
        %v275 = vpop.f32.mrf.mxu0
        %v276 = vadd.f32 %v248, %v275
        %277 = vdwg.mxu0
        %278 = vst [vmem:[%s215] sm:$0x3] %v276
        %279 = vst [vmem:[%s241 - $0x2] sm:$0x1c] %v276
        %s280 = sand.u32 %s111, 1
        %s281 = scalar_lea.sflag [#allocation3], %s280
        %s282 = sand.u32 %s111, 1
        %s283 = smul.addr %s282, 2
        %s284 = scalar_lea.vmem [#allocation2], %s283
        %p285 = scmp.lt.s32.totalorder %s23, 1
        %s286 = scalar_select %p285, %s23, 1
        %p287 = scmp.lt.s32.totalorder %s24, 1
        %s288 = scalar_select %p287, %s24, 1
        %s289 = smul.addr %s286, 2
        %s290 = sadd.s32 %s288, %s289
        %s291 = smul.addr %s290, 4
        %s292 = scalar_lea.vmem %s4, %s291
        // Predicated region
        $region33: #{tpu_custom_call.1} parent=31 // pred_check
          %p293 = pneg %p121
        $region34: #{tpu_custom_call.1} parent=31 // pred_check_branch
          %295 = sbr.rel (%p293) target = $region36
        $region35: #{tpu_custom_call.1} parent=31 // pred_region
          %297 = vsyncadd %s281, 0
          %s298 = smul.addr %s23, 2
          %s299 = sadd.s32 %s24, %s298
          %s300 = smul.addr %s299, 2
          %s301 = scalar_lea.hbm %s3, %s300
          %s303 = sshll.u32 %s284, 4
          %s304 = int_to_ptr.vmem [resolvable:$true] %s303
          %s305 = sshll.u32 %s301, 4
          %s306 = int_to_ptr.hbm [resolvable:$true] %s305
          %308 = dma.vmem_to_hbm [thread:$0]  %s304, 32, %s306, %s281
        $region36: #{tpu_custom_call.1} parent=31 // pred_fallthru
          _
        // Predicated region
        $region37: #{tpu_custom_call.1} parent=31 // pred_check
          %p309 = pneg %p149
        $region38: #{tpu_custom_call.1} parent=31 // pred_check_branch
          %311 = sbr.rel (%p309) target = $region40
        $region39: #{tpu_custom_call.1} parent=31 // pred_region
          _
        $region40: #{tpu_custom_call.1} parent=31 // pred_fallthru
          _
      $region32: #{tpu_custom_call.1} parent=5 // pred_fallthru
        _
      %p312 = scmp.le.s32.totalorder 2, %s14
      // Predicated region
      $region41: #{tpu_custom_call.1} parent=5 // pred_check
        %p313 = pneg %p312
      $region42: #{tpu_custom_call.1} parent=5 // pred_check_branch
        %315 = sbr.rel (%p313) target = $region44
      $region43: #{tpu_custom_call.1} parent=5 // pred_region
        %s316 = ssub.s32 %s14, 2
        // Predicated region
        $region45: #{tpu_custom_call.1} parent=43 // pred_check
          %p317 = pneg %p127
        $region46: #{tpu_custom_call.1} parent=43 // pred_check_branch
          %319 = sbr.rel (%p317) target = $region48
        $region47: #{tpu_custom_call.1} parent=43 // pred_region
          %s320 = sand.u32 %s112, 1
          %s321 = scalar_lea.sflag [#allocation3], %s320
          %s322 = sand.u32 %s112, 1
          %s323 = smul.addr %s322, 2
          %s324 = scalar_lea.vmem [#allocation2], %s323
          %326 = dma.done %s321, 32
        $region48: #{tpu_custom_call.1} parent=43 // pred_fallthru
          _
        // Predicated region
        $region49: #{tpu_custom_call.1} parent=43 // pred_check
          %p327 = pneg %p155
        $region50: #{tpu_custom_call.1} parent=43 // pred_check_branch
          %329 = sbr.rel (%p327) target = $region52
        $region51: #{tpu_custom_call.1} parent=43 // pred_region
          %p330 = scmp.lt.s32.totalorder %s25, 1
          %s331 = scalar_select %p330, %s25, 1
          %p332 = scmp.lt.s32.totalorder %s26, 1
          %s333 = scalar_select %p332, %s26, 1
          %s334 = smul.addr %s331, 2
          %s335 = sadd.s32 %s333, %s334
          %s336 = smul.addr %s335, 4
          %s337 = scalar_lea.vmem %s4, %s336
        $region52: #{tpu_custom_call.1} parent=43 // pred_fallthru
          _
      $region44: #{tpu_custom_call.1} parent=5 // pred_fallthru
        _
    $region6: #{tpu_custom_call.1} parent=1 // loop_footer
      %s18 = sadd.s32 1, %s14
    $region7: #{tpu_custom_call.1} parent=1 // loop_footer_branch
      %13 = sbr.rel target = $region3
    $region8: #{tpu_custom_call.1} parent=1 // loop_exit
      _
    %338 = vsyncpa [#allocation3], 1
    %s339 = scalar_lea.sflag [#allocation3], 1
    %340 = vsyncpa %s339, 1

</llo_original>
